<compile_context>
chip_gen: v6e
topology: v6e:2x2x1
jax: 0.10.0
libtpu: 0.0.40
codegen_flags: <defaults>
</compile_context>

<pallas_src>
import functools

import jax
import jax.numpy as jnp
from jax.experimental import pallas as pl
from jax.experimental.pallas import tpu as pltpu

# ------------------------- model hyper-parameters (small) -------------------------
N_AGENTS = 8
INPUT_DIM = 64
HIDDEN = 32
N_HEADS = 4
HEAD_DIM = HIDDEN // N_HEADS
MAX_NEIGHBORS = 4
N_ACTIONS = 6


# --------------------------------- Pallas kernel ----------------------------------
def dgn_kernel(
    # inputs
    x_ref, mask_ref,
    enc_w_ref, enc_b_ref,
    w_in1_ref, b_in1_ref, seg_ref, expand_ref,
    wo1_ref, bo1_ref,
    w2_ref, b2_ref,
    qw0_ref, qw1_ref, qw2_ref, qb_ref,
    # output
    q_out_ref,
):
    f32 = jnp.float32
    x = x_ref[...]                                                     # (B, D_in)
    mask = mask_ref[...]                                               # (B, M, N)
    H = HIDDEN

    # ---- Encoder: ReLU(Linear) ----
    x_enc = jnp.maximum(
        jnp.dot(x, enc_w_ref[...], preferred_element_type=f32) + enc_b_ref[...], 0.0
    )                                                                  # (B, H)

    # ---- torch.bmm(mask, broadcast(x_enc)) has rank-1 structure:
    #      x_feats[i, j, :] = row_sum[i, j] * x_enc[i, :]
    r = jnp.sum(mask, axis=-1)                                         # (B, M)

    # ---- Attention layer 1 (query length 1 per agent, rank-1 keys/values) ----
    # Fused in-projection: [q | xk | xv] = x_enc @ [wq1 | wk1 | wv1] + [bq1 | 0 | 0]
    proj = jnp.dot(x_enc, w_in1_ref[...], preferred_element_type=f32) + b_in1_ref[...]
    q = proj[:, :H]                                                    # (B, H)  (with bq1)
    xk = proj[:, H:2 * H]                                              # (B, H)  (bk1 cancels in softmax)
    xv = proj[:, 2 * H:]                                               # (B, H)  (bv1 folded into bo1)

    # Per-head logits: s[i, h] = scale * <q_h[i], xk_h[i]>  (seg has scale folded in).
    s = jnp.dot(q * xk, seg_ref[...], preferred_element_type=f32)      # (B, n_heads)

    # scores[i, h, j] = s[i, h] * r[i, j];  softmax over the M neighbor axis.
    scores = s[:, :, None] * r[:, None, :]                             # (B, n_heads, M)
    e = jnp.exp(scores - jnp.max(scores, axis=-1, keepdims=True))      # (B, n_heads, M)
    denom = jnp.sum(e, axis=-1)                                        # (B, n_heads)
    num = jnp.sum(e * r[:, None, :], axis=-1)                          # (B, n_heads)
    w = num * pl.reciprocal(denom, approx=True)                        # (B, n_heads)

    # Per-head output = w_h * xv_h  (value bias handled in folded bo1); broadcast the
    # per-head weight to head_dim lanes with a constant block matrix on the MXU.
    o = jnp.dot(w, expand_ref[...], preferred_element_type=f32) * xv   # (B, H)
    h1 = jnp.dot(o, wo1_ref[...], preferred_element_type=f32) + bo1_ref[...]   # (B, H)

    # ---- Attention layer 2: kv sequence length 1 -> softmax == 1 -> fused linear ----
    h2 = jnp.dot(h1, w2_ref[...], preferred_element_type=f32) + b2_ref[...]    # (B, H)

    # ---- QNet: Linear(cat(x_enc, h1, h2)) as three accumulating matmuls ----
    q_out_ref[...] = (
        jnp.dot(x_enc, qw0_ref[...], preferred_element_type=f32)
        + jnp.dot(h1, qw1_ref[...], preferred_element_type=f32)
        + jnp.dot(h2, qw2_ref[...], preferred_element_type=f32)
        + qb_ref[...]
    )  # (B, n_actions) -- accept the masked store for the 6-wide last dim.


# ------------------------------ parameter folding ----------------------------------
def fold_params(p):
    """Pre-fold torch-style params into the fused layout the kernel consumes."""
    f32 = jnp.float32
    scale = 1.0 / (HEAD_DIM ** 0.5)
    head_id = jnp.arange(HIDDEN, dtype=jnp.int32) // HEAD_DIM
    # seg   (H, n_heads): per-head segment sum, with the 1/sqrt(head_dim) scale folded in
    seg = (head_id[:, None] == jnp.arange(N_HEADS)[None, :]).astype(f32) * scale
    # expand (n_heads, H): broadcast a per-head scalar back to head_dim lanes
    expand = (jnp.arange(N_HEADS)[:, None] == head_id[None, :]).astype(f32)
    zeros_b = jnp.zeros_like(p["bq1"])

    return {
        "enc_w": p["enc_w"], "enc_b": p["enc_b"],
        # fused layer-1 in-projection
        "w_in1": jnp.concatenate([p["wq1"], p["wk1"], p["wv1"]], axis=1),   # (H, 3H)
        "b_in1": jnp.concatenate([p["bq1"], zeros_b, zeros_b], axis=1),     # (1, 3H)
        "seg": seg, "expand": expand,
        "wo1": p["wo1"],
        "bo1": p["bv1"] @ p["wo1"] + p["bo1"],                              # folds value bias
        # layer 2 collapsed (kv seq len 1): h2 = h1 @ (wv2@wo2) + (bv2@wo2 + bo2)
        "w2": p["wv2"] @ p["wo2"],
        "b2": p["bv2"] @ p["wo2"] + p["bo2"],
        # QNet split along the concat axis
        "qw0": p["qw"][:HIDDEN],
        "qw1": p["qw"][HIDDEN:2 * HIDDEN],
        "qw2": p["qw"][2 * HIDDEN:],
        "qb": p["qb"],
    }


# ----------------------------------- wrapper --------------------------------------
def _full_block_spec(shape):
    nd = len(shape)
    return pl.BlockSpec(shape, functools.partial(lambda n, i: (0,) * n, nd))


def dgn_forward(x, mask, params):
    """Run the fused DGN forward."""
    f = fold_params(params)
    inputs = (
        x, mask,
        f["enc_w"], f["enc_b"],
        f["w_in1"], f["b_in1"], f["seg"], f["expand"],
        f["wo1"], f["bo1"],
        f["w2"], f["b2"],
        f["qw0"], f["qw1"], f["qw2"], f["qb"],
    )
    in_specs = [_full_block_spec(a.shape) for a in inputs]
    out_shape = jax.ShapeDtypeStruct((x.shape[0], N_ACTIONS), jnp.float32)
    return pl.pallas_call(
        dgn_kernel,
        out_shape=out_shape,
        grid=(1,),
        in_specs=in_specs,
        out_specs=pl.BlockSpec(out_shape.shape, lambda i: (0, 0)),
        compiler_params=pltpu.CompilerParams(dimension_semantics=("arbitrary",)),
    )(*inputs)


# ------------------------- deterministic parameter init ---------------------------
def init_params(key):
    ks = jax.random.split(key, 24)
    s = 0.1

    def w(k, shape):
        return (s * jax.random.normal(k, shape)).astype(jnp.float32)

    p = {}
    # Encoder: Linear(INPUT_DIM -> HIDDEN), stored as (in, out)
    p["enc_w"] = w(ks[0], (INPUT_DIM, HIDDEN))
    p["enc_b"] = w(ks[1], (1, HIDDEN))
    # Attention layer 1 (nn.MultiheadAttention: in_proj split into q/k/v, + out_proj)
    p["wq1"], p["wk1"], p["wv1"] = (w(ks[i], (HIDDEN, HIDDEN)) for i in (2, 3, 4))
    p["bq1"], p["bk1"], p["bv1"] = (w(ks[i], (1, HIDDEN)) for i in (5, 6, 7))
    p["wo1"] = w(ks[8], (HIDDEN, HIDDEN))
    p["bo1"] = w(ks[9], (1, HIDDEN))
    # Attention layer 2 (wq2/wk2/bq2/bk2 exist but are inert for kv seq len 1)
    p["wq2"], p["wk2"], p["wv2"] = (w(ks[i], (HIDDEN, HIDDEN)) for i in (10, 11, 12))
    p["bq2"], p["bk2"], p["bv2"] = (w(ks[i], (1, HIDDEN)) for i in (13, 14, 15))
    p["wo2"] = w(ks[16], (HIDDEN, HIDDEN))
    p["bo2"] = w(ks[17], (1, HIDDEN))
    # QNet: Linear(3*HIDDEN -> N_ACTIONS)
    p["qw"] = w(ks[18], (3 * HIDDEN, N_ACTIONS))
    p["qb"] = w(ks[19], (1, N_ACTIONS))
    return p


# ------------------------------ pure-JAX reference ---------------------------------
def dgn_reference(x, mask, p):
    """Full-fidelity mirror of the PyTorch forward (unfused weights, both MHA layers)."""
    hi = jax.lax.Precision.HIGHEST
    x_enc = jnp.maximum(jnp.dot(x, p["enc_w"], precision=hi) + p["enc_b"], 0.0)
    B, H = x_enc.shape
    # torch.broadcast_to(x_enc[:, None, :], (B, N_AGENTS, H)) then torch.bmm(mask, .)
    fb = jnp.broadcast_to(x_enc[:, None, :], (B, N_AGENTS, H))
    x_feats = jnp.einsum("bmn,bnh->bmh", mask, fb, precision=hi)

    def mha(q_in, kv, wq, wk, wv, bq, bk, bv, wo, bo):
        B, H = q_in.shape
        M = kv.shape[1]
        hd = H // N_HEADS
        q = (jnp.dot(q_in, wq, precision=hi) + bq).reshape(B, N_HEADS, hd)
        k = (jnp.einsum("bmh,hj->bmj", kv, wk, precision=hi) + bk).reshape(B, M, N_HEADS, hd)
        v = (jnp.einsum("bmh,hj->bmj", kv, wv, precision=hi) + bv).reshape(B, M, N_HEADS, hd)
        scores = jnp.einsum("bnd,bmnd->bnm", q, k, precision=hi) / (hd ** 0.5)
        a = jax.nn.softmax(scores, axis=-1)
        o = jnp.einsum("bnm,bmnd->bnd", a, v, precision=hi).reshape(B, H)
        return jnp.dot(o, wo, precision=hi) + bo

    h1 = mha(x_enc, x_feats, p["wq1"], p["wk1"], p["wv1"],
             p["bq1"], p["bk1"], p["bv1"], p["wo1"], p["bo1"])
    h2 = mha(x_enc, h1[:, None, :], p["wq2"], p["wk2"], p["wv2"],
             p["bq2"], p["bk2"], p["bv2"], p["wo2"], p["bo2"])
    feat = jnp.concatenate([x_enc, h1, h2], axis=-1)
    return jnp.dot(feat, p["qw"], precision=hi) + p["qb"]


# -------------------------------------- main ---------------------------------------
if __name__ == "__main__":
    key = jax.random.PRNGKey(0)
    k_x, k_m, k_p = jax.random.split(key, 3)

    x = jax.random.normal(k_x, (N_AGENTS, INPUT_DIM), dtype=jnp.float32)
    mask = jax.random.bernoulli(k_m, p=0.5, shape=(N_AGENTS, MAX_NEIGHBORS, N_AGENTS))
    mask = mask.astype(jnp.float32)

    params = init_params(k_p)

    q = dgn_forward(x, mask, params)
    q = jax.block_until_ready(q)

    q_ref = dgn_reference(x, mask, params)
    assert q.shape == (N_AGENTS, N_ACTIONS)
    assert jnp.allclose(q, q_ref, atol=2e-2, rtol=2e-2)

    print("KERNEL_OK")
</pallas_src>

<mosaic_0001>
module attributes {stable_mosaic.version = 11 : i64} {
  func.func @dgn_kernel(%arg0: i32, %arg1: memref<8x64xf32, #tpu.memory_space<vmem>>, %arg2: memref<8x4x8xf32, #tpu.memory_space<vmem>>, %arg3: memref<64x32xf32, #tpu.memory_space<vmem>>, %arg4: memref<1x32xf32, #tpu.memory_space<vmem>>, %arg5: memref<32x96xf32, #tpu.memory_space<vmem>>, %arg6: memref<1x96xf32, #tpu.memory_space<vmem>>, %arg7: memref<32x4xf32, #tpu.memory_space<vmem>>, %arg8: memref<4x32xf32, #tpu.memory_space<vmem>>, %arg9: memref<32x32xf32, #tpu.memory_space<vmem>>, %arg10: memref<1x32xf32, #tpu.memory_space<vmem>>, %arg11: memref<32x32xf32, #tpu.memory_space<vmem>>, %arg12: memref<1x32xf32, #tpu.memory_space<vmem>>, %arg13: memref<32x6xf32, #tpu.memory_space<vmem>>, %arg14: memref<32x6xf32, #tpu.memory_space<vmem>>, %arg15: memref<32x6xf32, #tpu.memory_space<vmem>>, %arg16: memref<1x6xf32, #tpu.memory_space<vmem>>, %arg17: memref<8x6xf32, #tpu.memory_space<vmem>>) attributes {dimension_semantics = [#tpu.dimension_semantics<arbitrary>], iteration_bounds = array<i64: 1>, scalar_prefetch = 0 : i64, scratch_operands = 0 : i64, tpu.core_type = #tpu.core_type<tc>, window_params = [{pipeline_mode = #tpu.pipeline_mode<synchronous>, transform_indices = @transform_0, window_bounds = array<i64: 8, 64>}, {pipeline_mode = #tpu.pipeline_mode<synchronous>, transform_indices = @transform_1, window_bounds = array<i64: 8, 4, 8>}, {pipeline_mode = #tpu.pipeline_mode<synchronous>, transform_indices = @transform_2, window_bounds = array<i64: 64, 32>}, {pipeline_mode = #tpu.pipeline_mode<synchronous>, transform_indices = @transform_3, window_bounds = array<i64: 1, 32>}, {pipeline_mode = #tpu.pipeline_mode<synchronous>, transform_indices = @transform_4, window_bounds = array<i64: 32, 96>}, {pipeline_mode = #tpu.pipeline_mode<synchronous>, transform_indices = @transform_5, window_bounds = array<i64: 1, 96>}, {pipeline_mode = #tpu.pipeline_mode<synchronous>, transform_indices = @transform_6, window_bounds = array<i64: 32, 4>}, {pipeline_mode = #tpu.pipeline_mode<synchronous>, transform_indices = @transform_7, window_bounds = array<i64: 4, 32>}, {pipeline_mode = #tpu.pipeline_mode<synchronous>, transform_indices = @transform_8, window_bounds = array<i64: 32, 32>}, {pipeline_mode = #tpu.pipeline_mode<synchronous>, transform_indices = @transform_9, window_bounds = array<i64: 1, 32>}, {pipeline_mode = #tpu.pipeline_mode<synchronous>, transform_indices = @transform_10, window_bounds = array<i64: 32, 32>}, {pipeline_mode = #tpu.pipeline_mode<synchronous>, transform_indices = @transform_11, window_bounds = array<i64: 1, 32>}, {pipeline_mode = #tpu.pipeline_mode<synchronous>, transform_indices = @transform_12, window_bounds = array<i64: 32, 6>}, {pipeline_mode = #tpu.pipeline_mode<synchronous>, transform_indices = @transform_13, window_bounds = array<i64: 32, 6>}, {pipeline_mode = #tpu.pipeline_mode<synchronous>, transform_indices = @transform_14, window_bounds = array<i64: 32, 6>}, {pipeline_mode = #tpu.pipeline_mode<synchronous>, transform_indices = @transform_15, window_bounds = array<i64: 1, 6>}, {pipeline_mode = #tpu.pipeline_mode<synchronous>, transform_indices = @transform_16, window_bounds = array<i64: 8, 6>}]} {
    %c0 = arith.constant 0 : index
    %c0_0 = arith.constant 0 : index
    %0 = vector.load %arg1[%c0, %c0_0] : memref<8x64xf32, #tpu.memory_space<vmem>>, vector<8x64xf32>
    %c0_1 = arith.constant 0 : index
    %c0_2 = arith.constant 0 : index
    %c0_3 = arith.constant 0 : index
    %1 = vector.load %arg2[%c0_1, %c0_2, %c0_3] : memref<8x4x8xf32, #tpu.memory_space<vmem>>, vector<8x4x8xf32>
    %c0_4 = arith.constant 0 : index
    %c0_5 = arith.constant 0 : index
    %2 = vector.load %arg3[%c0_4, %c0_5] : memref<64x32xf32, #tpu.memory_space<vmem>>, vector<64x32xf32>
    %cst = arith.constant dense<0.000000e+00> : vector<8x32xf32>
    %3 = tpu.matmul %0, %2, %cst {dimension_numbers = #tpu.dot_dimension_numbers<[1], [0], [0], [1], [0, 0, 1, 1], [], []>} : vector<8x64xf32>, vector<64x32xf32>, vector<8x32xf32> -> vector<8x32xf32>
    %c0_6 = arith.constant 0 : index
    %c0_7 = arith.constant 0 : index
    %4 = vector.load %arg4[%c0_6, %c0_7] : memref<1x32xf32, #tpu.memory_space<vmem>>, vector<1x32xf32>
    %5 = vector.broadcast %4 : vector<1x32xf32> to vector<8x32xf32>
    %6 = arith.addf %3, %5 : vector<8x32xf32>
    %cst_8 = arith.constant 0.000000e+00 : f32
    %7 = vector.broadcast %cst_8 : f32 to vector<8x32xf32>
    %8 = arith.maximumf %6, %7 : vector<8x32xf32>
    %cst_9 = arith.constant dense<0.000000e+00> : vector<8x4xf32>
    %9 = vector.multi_reduction <add>, %1, %cst_9 [2] : vector<8x4x8xf32> to vector<8x4xf32>
    %c0_10 = arith.constant 0 : index
    %c0_11 = arith.constant 0 : index
    %10 = vector.load %arg5[%c0_10, %c0_11] : memref<32x96xf32, #tpu.memory_space<vmem>>, vector<32x96xf32>
    %cst_12 = arith.constant dense<0.000000e+00> : vector<8x96xf32>
    %11 = tpu.matmul %8, %10, %cst_12 {dimension_numbers = #tpu.dot_dimension_numbers<[1], [0], [0], [1], [0, 0, 1, 1], [], []>} : vector<8x32xf32>, vector<32x96xf32>, vector<8x96xf32> -> vector<8x96xf32>
    %c0_13 = arith.constant 0 : index
    %c0_14 = arith.constant 0 : index
    %12 = vector.load %arg6[%c0_13, %c0_14] : memref<1x96xf32, #tpu.memory_space<vmem>>, vector<1x96xf32>
    %13 = vector.broadcast %12 : vector<1x96xf32> to vector<8x96xf32>
    %14 = arith.addf %11, %13 : vector<8x96xf32>
    %15 = vector.extract_strided_slice %14 {offsets = [0, 0], sizes = [8, 32], strides = [1, 1]} : vector<8x96xf32> to vector<8x32xf32>
    %16 = vector.extract_strided_slice %14 {offsets = [0, 32], sizes = [8, 32], strides = [1, 1]} : vector<8x96xf32> to vector<8x32xf32>
    %17 = vector.extract_strided_slice %14 {offsets = [0, 64], sizes = [8, 32], strides = [1, 1]} : vector<8x96xf32> to vector<8x32xf32>
    %18 = arith.mulf %15, %16 : vector<8x32xf32>
    %c0_15 = arith.constant 0 : index
    %c0_16 = arith.constant 0 : index
    %19 = vector.load %arg7[%c0_15, %c0_16] : memref<32x4xf32, #tpu.memory_space<vmem>>, vector<32x4xf32>
    %cst_17 = arith.constant dense<0.000000e+00> : vector<8x4xf32>
    %20 = tpu.matmul %18, %19, %cst_17 {dimension_numbers = #tpu.dot_dimension_numbers<[1], [0], [0], [1], [0, 0, 1, 1], [], []>} : vector<8x32xf32>, vector<32x4xf32>, vector<8x4xf32> -> vector<8x4xf32>
    %21 = vector.shape_cast %20 : vector<8x4xf32> to vector<8x4x1xf32>
    %22 = vector.shape_cast %9 : vector<8x4xf32> to vector<8x1x4xf32>
    %23 = vector.broadcast %21 : vector<8x4x1xf32> to vector<8x4x4xf32>
    %24 = vector.broadcast %22 : vector<8x1x4xf32> to vector<8x4x4xf32>
    %25 = arith.mulf %23, %24 : vector<8x4x4xf32>
    %cst_18 = arith.constant dense<0xFF800000> : vector<8x4xf32>
    %26 = vector.multi_reduction <maximumf>, %25, %cst_18 [2] : vector<8x4x4xf32> to vector<8x4xf32>
    %27 = vector.shape_cast %26 : vector<8x4xf32> to vector<8x4x1xf32>
    %28 = vector.broadcast %27 : vector<8x4x1xf32> to vector<8x4x4xf32>
    %29 = arith.subf %25, %28 : vector<8x4x4xf32>
    %30 = math.exp %29 : vector<8x4x4xf32>
    %cst_19 = arith.constant dense<0.000000e+00> : vector<8x4xf32>
    %31 = vector.multi_reduction <add>, %30, %cst_19 [2] : vector<8x4x4xf32> to vector<8x4xf32>
    %32 = vector.shape_cast %9 : vector<8x4xf32> to vector<8x1x4xf32>
    %33 = vector.broadcast %32 : vector<8x1x4xf32> to vector<8x4x4xf32>
    %34 = arith.mulf %30, %33 : vector<8x4x4xf32>
    %cst_20 = arith.constant dense<0.000000e+00> : vector<8x4xf32>
    %35 = vector.multi_reduction <add>, %34, %cst_20 [2] : vector<8x4x4xf32> to vector<8x4xf32>
    %36 = tpu.reciprocal %31 {approx = true} : vector<8x4xf32> -> vector<8x4xf32>
    %37 = arith.mulf %35, %36 : vector<8x4xf32>
    %c0_21 = arith.constant 0 : index
    %c0_22 = arith.constant 0 : index
    %38 = vector.load %arg8[%c0_21, %c0_22] : memref<4x32xf32, #tpu.memory_space<vmem>>, vector<4x32xf32>
    %cst_23 = arith.constant dense<0.000000e+00> : vector<8x32xf32>
    %39 = tpu.matmul %37, %38, %cst_23 {dimension_numbers = #tpu.dot_dimension_numbers<[1], [0], [0], [1], [0, 0, 1, 1], [], []>} : vector<8x4xf32>, vector<4x32xf32>, vector<8x32xf32> -> vector<8x32xf32>
    %40 = arith.mulf %39, %17 : vector<8x32xf32>
    %c0_24 = arith.constant 0 : index
    %c0_25 = arith.constant 0 : index
    %41 = vector.load %arg9[%c0_24, %c0_25] : memref<32x32xf32, #tpu.memory_space<vmem>>, vector<32x32xf32>
    %cst_26 = arith.constant dense<0.000000e+00> : vector<8x32xf32>
    %42 = tpu.matmul %40, %41, %cst_26 {dimension_numbers = #tpu.dot_dimension_numbers<[1], [0], [0], [1], [0, 0, 1, 1], [], []>} : vector<8x32xf32>, vector<32x32xf32>, vector<8x32xf32> -> vector<8x32xf32>
    %c0_27 = arith.constant 0 : index
    %c0_28 = arith.constant 0 : index
    %43 = vector.load %arg10[%c0_27, %c0_28] : memref<1x32xf32, #tpu.memory_space<vmem>>, vector<1x32xf32>
    %44 = vector.broadcast %43 : vector<1x32xf32> to vector<8x32xf32>
    %45 = arith.addf %42, %44 : vector<8x32xf32>
    %c0_29 = arith.constant 0 : index
    %c0_30 = arith.constant 0 : index
    %46 = vector.load %arg11[%c0_29, %c0_30] : memref<32x32xf32, #tpu.memory_space<vmem>>, vector<32x32xf32>
    %cst_31 = arith.constant dense<0.000000e+00> : vector<8x32xf32>
    %47 = tpu.matmul %45, %46, %cst_31 {dimension_numbers = #tpu.dot_dimension_numbers<[1], [0], [0], [1], [0, 0, 1, 1], [], []>} : vector<8x32xf32>, vector<32x32xf32>, vector<8x32xf32> -> vector<8x32xf32>
    %c0_32 = arith.constant 0 : index
    %c0_33 = arith.constant 0 : index
    %48 = vector.load %arg12[%c0_32, %c0_33] : memref<1x32xf32, #tpu.memory_space<vmem>>, vector<1x32xf32>
    %49 = vector.broadcast %48 : vector<1x32xf32> to vector<8x32xf32>
    %50 = arith.addf %47, %49 : vector<8x32xf32>
    %c0_34 = arith.constant 0 : index
    %c0_35 = arith.constant 0 : index
    %51 = vector.load %arg13[%c0_34, %c0_35] : memref<32x6xf32, #tpu.memory_space<vmem>>, vector<32x6xf32>
    %cst_36 = arith.constant dense<0.000000e+00> : vector<8x6xf32>
    %52 = tpu.matmul %8, %51, %cst_36 {dimension_numbers = #tpu.dot_dimension_numbers<[1], [0], [0], [1], [0, 0, 1, 1], [], []>} : vector<8x32xf32>, vector<32x6xf32>, vector<8x6xf32> -> vector<8x6xf32>
    %c0_37 = arith.constant 0 : index
    %c0_38 = arith.constant 0 : index
    %53 = vector.load %arg14[%c0_37, %c0_38] : memref<32x6xf32, #tpu.memory_space<vmem>>, vector<32x6xf32>
    %cst_39 = arith.constant dense<0.000000e+00> : vector<8x6xf32>
    %54 = tpu.matmul %45, %53, %cst_39 {dimension_numbers = #tpu.dot_dimension_numbers<[1], [0], [0], [1], [0, 0, 1, 1], [], []>} : vector<8x32xf32>, vector<32x6xf32>, vector<8x6xf32> -> vector<8x6xf32>
    %55 = arith.addf %52, %54 : vector<8x6xf32>
    %c0_40 = arith.constant 0 : index
    %c0_41 = arith.constant 0 : index
    %56 = vector.load %arg15[%c0_40, %c0_41] : memref<32x6xf32, #tpu.memory_space<vmem>>, vector<32x6xf32>
    %cst_42 = arith.constant dense<0.000000e+00> : vector<8x6xf32>
    %57 = tpu.matmul %50, %56, %cst_42 {dimension_numbers = #tpu.dot_dimension_numbers<[1], [0], [0], [1], [0, 0, 1, 1], [], []>} : vector<8x32xf32>, vector<32x6xf32>, vector<8x6xf32> -> vector<8x6xf32>
    %58 = arith.addf %55, %57 : vector<8x6xf32>
    %c0_43 = arith.constant 0 : index
    %c0_44 = arith.constant 0 : index
    %59 = vector.load %arg16[%c0_43, %c0_44] : memref<1x6xf32, #tpu.memory_space<vmem>>, vector<1x6xf32>
    %60 = vector.broadcast %59 : vector<1x6xf32> to vector<8x6xf32>
    %61 = arith.addf %58, %60 : vector<8x6xf32>
    %c0_45 = arith.constant 0 : index
    %c0_46 = arith.constant 0 : index
    %62 = vector.load %arg17[%c0_45, %c0_46] : memref<8x6xf32, #tpu.memory_space<vmem>>, vector<8x6xf32>
    tpu.vector_store %arg17[%c0_45, %c0_46], %61 {strides = array<i32>} : memref<8x6xf32, #tpu.memory_space<vmem>>, vector<8x6xf32>,
    return
  }
  func.func @transform_0(%arg0: i32) -> (i32, i32) {
    %c0_i32 = arith.constant 0 : i32
    %c0_i32_0 = arith.constant 0 : i32
    %c0_i32_1 = arith.constant 0 : i32
    return %c0_i32, %c0_i32_0 : i32, i32
  }
  func.func @transform_1(%arg0: i32) -> (i32, i32, i32) {
    %c0_i32 = arith.constant 0 : i32
    %c0_i32_0 = arith.constant 0 : i32
    %c0_i32_1 = arith.constant 0 : i32
    %c0_i32_2 = arith.constant 0 : i32
    return %c0_i32, %c0_i32_0, %c0_i32_1 : i32, i32, i32
  }
  func.func @transform_2(%arg0: i32) -> (i32, i32) {
    %c0_i32 = arith.constant 0 : i32
    %c0_i32_0 = arith.constant 0 : i32
    %c0_i32_1 = arith.constant 0 : i32
    return %c0_i32, %c0_i32_0 : i32, i32
  }
  func.func @transform_3(%arg0: i32) -> (i32, i32) {
    %c0_i32 = arith.constant 0 : i32
    %c0_i32_0 = arith.constant 0 : i32
    %c0_i32_1 = arith.constant 0 : i32
    return %c0_i32, %c0_i32_0 : i32, i32
  }
  func.func @transform_4(%arg0: i32) -> (i32, i32) {
    %c0_i32 = arith.constant 0 : i32
    %c0_i32_0 = arith.constant 0 : i32
    %c0_i32_1 = arith.constant 0 : i32
    return %c0_i32, %c0_i32_0 : i32, i32
  }
  func.func @transform_5(%arg0: i32) -> (i32, i32) {
    %c0_i32 = arith.constant 0 : i32
    %c0_i32_0 = arith.constant 0 : i32
    %c0_i32_1 = arith.constant 0 : i32
    return %c0_i32, %c0_i32_0 : i32, i32
  }
  func.func @transform_6(%arg0: i32) -> (i32, i32) {
    %c0_i32 = arith.constant 0 : i32
    %c0_i32_0 = arith.constant 0 : i32
    %c0_i32_1 = arith.constant 0 : i32
    return %c0_i32, %c0_i32_0 : i32, i32
  }
  func.func @transform_7(%arg0: i32) -> (i32, i32) {
    %c0_i32 = arith.constant 0 : i32
    %c0_i32_0 = arith.constant 0 : i32
    %c0_i32_1 = arith.constant 0 : i32
    return %c0_i32, %c0_i32_0 : i32, i32
  }
  func.func @transform_8(%arg0: i32) -> (i32, i32) {
    %c0_i32 = arith.constant 0 : i32
    %c0_i32_0 = arith.constant 0 : i32
    %c0_i32_1 = arith.constant 0 : i32
    return %c0_i32, %c0_i32_0 : i32, i32
  }
  func.func @transform_9(%arg0: i32) -> (i32, i32) {
    %c0_i32 = arith.constant 0 : i32
    %c0_i32_0 = arith.constant 0 : i32
    %c0_i32_1 = arith.constant 0 : i32
    return %c0_i32, %c0_i32_0 : i32, i32
  }
  func.func @transform_10(%arg0: i32) -> (i32, i32) {
    %c0_i32 = arith.constant 0 : i32
    %c0_i32_0 = arith.constant 0 : i32
    %c0_i32_1 = arith.constant 0 : i32
    return %c0_i32, %c0_i32_0 : i32, i32
  }
  func.func @transform_11(%arg0: i32) -> (i32, i32) {
    %c0_i32 = arith.constant 0 : i32
    %c0_i32_0 = arith.constant 0 : i32
    %c0_i32_1 = arith.constant 0 : i32
    return %c0_i32, %c0_i32_0 : i32, i32
  }
  func.func @transform_12(%arg0: i32) -> (i32, i32) {
    %c0_i32 = arith.constant 0 : i32
    %c0_i32_0 = arith.constant 0 : i32
    %c0_i32_1 = arith.constant 0 : i32
    return %c0_i32, %c0_i32_0 : i32, i32
  }
  func.func @transform_13(%arg0: i32) -> (i32, i32) {
    %c0_i32 = arith.constant 0 : i32
    %c0_i32_0 = arith.constant 0 : i32
    %c0_i32_1 = arith.constant 0 : i32
    return %c0_i32, %c0_i32_0 : i32, i32
  }
  func.func @transform_14(%arg0: i32) -> (i32, i32) {
    %c0_i32 = arith.constant 0 : i32
    %c0_i32_0 = arith.constant 0 : i32
    %c0_i32_1 = arith.constant 0 : i32
    return %c0_i32, %c0_i32_0 : i32, i32
  }
  func.func @transform_15(%arg0: i32) -> (i32, i32) {
    %c0_i32 = arith.constant 0 : i32
    %c0_i32_0 = arith.constant 0 : i32
    %c0_i32_1 = arith.constant 0 : i32
    return %c0_i32, %c0_i32_0 : i32, i32
  }
  func.func @transform_16(%arg0: i32) -> (i32, i32) {
    %c0_i32 = arith.constant 0 : i32
    %c0_i32_0 = arith.constant 0 : i32
    %c0_i32_1 = arith.constant 0 : i32
    return %c0_i32, %c0_i32_0 : i32, i32
  }
}

</mosaic_0001>

<llo_original>
// kernel: tpu_custom_call.1
$region0: #{tpu_custom_call.1}
  #allocation0 [shape = 'u32[]', space=smem, size = 0x4, offset = 0x4, fixed_abs, tag = 'smem constant byte address 0x4 - core index']
  #allocation1 [shape = 'u32[144,128]{1,0:T(1,128)}', space=vmem, size = 0x12000, scoped, tag = 'internal scratch']
  %s0 = inlined_call_operand.vmem [shape: f32[8,64], index: 0, kind: input, shape index: {}]
  %s1 = inlined_call_operand.vmem [shape: f32[8,4,8], index: 1, kind: input, shape index: {}]
  %s2 = inlined_call_operand.vmem [shape: f32[64,32], index: 2, kind: input, shape index: {}]
  %s3 = inlined_call_operand.vmem [shape: f32[1,32], index: 3, kind: input, shape index: {}]
  %s4 = inlined_call_operand.vmem [shape: f32[32,96], index: 4, kind: input, shape index: {}]
  %s5 = inlined_call_operand.vmem [shape: f32[1,96], index: 5, kind: input, shape index: {}]
  %s6 = inlined_call_operand.vmem [shape: f32[32,4], index: 6, kind: input, shape index: {}]
  %s7 = inlined_call_operand.vmem [shape: f32[4,32], index: 7, kind: input, shape index: {}]
  %s8 = inlined_call_operand.vmem [shape: f32[32,32], index: 8, kind: input, shape index: {}]
  %s9 = inlined_call_operand.vmem [shape: f32[1,32], index: 9, kind: input, shape index: {}]
  %s10 = inlined_call_operand.vmem [shape: f32[32,32], index: 10, kind: input, shape index: {}]
  %s11 = inlined_call_operand.vmem [shape: f32[1,32], index: 11, kind: input, shape index: {}]
  %s12 = inlined_call_operand.vmem [shape: f32[32,6], index: 12, kind: input, shape index: {}]
  %s13 = inlined_call_operand.vmem [shape: f32[32,6], index: 13, kind: input, shape index: {}]
  %s14 = inlined_call_operand.vmem [shape: f32[32,6], index: 14, kind: input, shape index: {}]
  %s15 = inlined_call_operand.vmem [shape: f32[1,6], index: 15, kind: input, shape index: {}]
  %s16 = inlined_call_operand.hbm [shape: f32[8,6], index: 16, kind: output, shape index: {}]
  %s17 = sld [smem:[#allocation0]]
  $region74: #{tpu_custom_call.1} parent=0
    _
  %s19 = ssub.s32 1, %s17
  %s20 = scalar_select 0, %s19, %s17
  $region1: #{tpu_custom_call.1} parent=0
    #allocation2 [shape = 'u8[4096]{0}', space=vmem, size = 0x1000, scoped, tag = 'output window, operand 0, single buffered']
    #allocation3 [shape = 's32[1]{0}', space=sflag, size = 0x4, scoped, tag = 'scoped memory for tpu_custom_call.1']
    %21 = vsyncpa [#allocation3], 0
    // Predicated region
    $region2: #{tpu_custom_call.1} parent=1 // pred_check
      _
    $region3: #{tpu_custom_call.1} parent=1 // pred_check_branch
      %23 = sbr.rel (0) target = $region5
    $region4: #{tpu_custom_call.1} parent=1 // pred_region
      _
    $region5: #{tpu_custom_call.1} parent=1 // pred_fallthru
      _
    // Predicated region
    $region6: #{tpu_custom_call.1} parent=1 // pred_check
      _
    $region7: #{tpu_custom_call.1} parent=1 // pred_check_branch
      %25 = sbr.rel (0) target = $region9
    $region8: #{tpu_custom_call.1} parent=1 // pred_region
      _
    $region9: #{tpu_custom_call.1} parent=1 // pred_fallthru
      _
    // Predicated region
    $region10: #{tpu_custom_call.1} parent=1 // pred_check
      _
    $region11: #{tpu_custom_call.1} parent=1 // pred_check_branch
      %27 = sbr.rel (0) target = $region13
    $region12: #{tpu_custom_call.1} parent=1 // pred_region
      _
    $region13: #{tpu_custom_call.1} parent=1 // pred_fallthru
      _
    // Predicated region
    $region14: #{tpu_custom_call.1} parent=1 // pred_check
      _
    $region15: #{tpu_custom_call.1} parent=1 // pred_check_branch
      %29 = sbr.rel (0) target = $region17
    $region16: #{tpu_custom_call.1} parent=1 // pred_region
      _
    $region17: #{tpu_custom_call.1} parent=1 // pred_fallthru
      _
    // Predicated region
    $region18: #{tpu_custom_call.1} parent=1 // pred_check
      _
    $region19: #{tpu_custom_call.1} parent=1 // pred_check_branch
      %31 = sbr.rel (0) target = $region21
    $region20: #{tpu_custom_call.1} parent=1 // pred_region
      _
    $region21: #{tpu_custom_call.1} parent=1 // pred_fallthru
      _
    // Predicated region
    $region22: #{tpu_custom_call.1} parent=1 // pred_check
      _
    $region23: #{tpu_custom_call.1} parent=1 // pred_check_branch
      %33 = sbr.rel (0) target = $region25
    $region24: #{tpu_custom_call.1} parent=1 // pred_region
      _
    $region25: #{tpu_custom_call.1} parent=1 // pred_fallthru
      _
    // Predicated region
    $region26: #{tpu_custom_call.1} parent=1 // pred_check
      _
    $region27: #{tpu_custom_call.1} parent=1 // pred_check_branch
      %35 = sbr.rel (0) target = $region29
    $region28: #{tpu_custom_call.1} parent=1 // pred_region
      _
    $region29: #{tpu_custom_call.1} parent=1 // pred_fallthru
      _
    // Predicated region
    $region30: #{tpu_custom_call.1} parent=1 // pred_check
      _
    $region31: #{tpu_custom_call.1} parent=1 // pred_check_branch
      %37 = sbr.rel (0) target = $region33
    $region32: #{tpu_custom_call.1} parent=1 // pred_region
      _
    $region33: #{tpu_custom_call.1} parent=1 // pred_fallthru
      _
    // Predicated region
    $region34: #{tpu_custom_call.1} parent=1 // pred_check
      _
    $region35: #{tpu_custom_call.1} parent=1 // pred_check_branch
      %39 = sbr.rel (0) target = $region37
    $region36: #{tpu_custom_call.1} parent=1 // pred_region
      _
    $region37: #{tpu_custom_call.1} parent=1 // pred_fallthru
      _
    // Predicated region
    $region38: #{tpu_custom_call.1} parent=1 // pred_check
      _
    $region39: #{tpu_custom_call.1} parent=1 // pred_check_branch
      %41 = sbr.rel (0) target = $region41
    $region40: #{tpu_custom_call.1} parent=1 // pred_region
      _
    $region41: #{tpu_custom_call.1} parent=1 // pred_fallthru
      _
    // Predicated region
    $region42: #{tpu_custom_call.1} parent=1 // pred_check
      _
    $region43: #{tpu_custom_call.1} parent=1 // pred_check_branch
      %43 = sbr.rel (0) target = $region45
    $region44: #{tpu_custom_call.1} parent=1 // pred_region
      _
    $region45: #{tpu_custom_call.1} parent=1 // pred_fallthru
      _
    // Predicated region
    $region46: #{tpu_custom_call.1} parent=1 // pred_check
      _
    $region47: #{tpu_custom_call.1} parent=1 // pred_check_branch
      %45 = sbr.rel (0) target = $region49
    $region48: #{tpu_custom_call.1} parent=1 // pred_region
      _
    $region49: #{tpu_custom_call.1} parent=1 // pred_fallthru
      _
    // Predicated region
    $region50: #{tpu_custom_call.1} parent=1 // pred_check
      _
    $region51: #{tpu_custom_call.1} parent=1 // pred_check_branch
      %47 = sbr.rel (0) target = $region53
    $region52: #{tpu_custom_call.1} parent=1 // pred_region
      _
    $region53: #{tpu_custom_call.1} parent=1 // pred_fallthru
      _
    // Predicated region
    $region54: #{tpu_custom_call.1} parent=1 // pred_check
      _
    $region55: #{tpu_custom_call.1} parent=1 // pred_check_branch
      %49 = sbr.rel (0) target = $region57
    $region56: #{tpu_custom_call.1} parent=1 // pred_region
      _
    $region57: #{tpu_custom_call.1} parent=1 // pred_fallthru
      _
    // Predicated region
    $region58: #{tpu_custom_call.1} parent=1 // pred_check
      _
    $region59: #{tpu_custom_call.1} parent=1 // pred_check_branch
      %51 = sbr.rel (0) target = $region61
    $region60: #{tpu_custom_call.1} parent=1 // pred_region
      _
    $region61: #{tpu_custom_call.1} parent=1 // pred_fallthru
      _
    // Predicated region
    $region62: #{tpu_custom_call.1} parent=1 // pred_check
      _
    $region63: #{tpu_custom_call.1} parent=1 // pred_check_branch
      %53 = sbr.rel (0) target = $region65
    $region64: #{tpu_custom_call.1} parent=1 // pred_region
      _
    $region65: #{tpu_custom_call.1} parent=1 // pred_fallthru
      _
    %v54 = vld [vmem:[%s0] sm:$0xff]
    %v55 = vld [vmem:[%s1] sm:$0xf]
    %v56 = vld [vmem:[%s1 + $0x4] sm:$0xf]
    %v57 = vld [vmem:[%s1 + $0x8] sm:$0xf]
    %v58 = vld [vmem:[%s1 + $0xc] sm:$0xf]
    %v59 = vld [vmem:[%s1 + $0x10] sm:$0xf]
    %v60 = vld [vmem:[%s1 + $0x14] sm:$0xf]
    %v61 = vld [vmem:[%s1 + $0x18] sm:$0xf]
    %v62 = vld [vmem:[%s1 + $0x1c] sm:$0xf]
    %v63 = vld [vmem:[%s2] sm:$0xff]
    %v64 = vld [vmem:[%s2 + $0x8] sm:$0xff]
    %v65 = vld [vmem:[%s2 + $0x10] sm:$0xff]
    %v66 = vld [vmem:[%s2 + $0x18] sm:$0xff]
    %v67 = vld [vmem:[%s2 + $0x20] sm:$0xff]
    %v68 = vld [vmem:[%s2 + $0x28] sm:$0xff]
    %v69 = vld [vmem:[%s2 + $0x30] sm:$0xff]
    %v70 = vld [vmem:[%s2 + $0x38] sm:$0xff]
    %v71 = vld [vmem:[%s3] sm:$0x1]
    %v73 = vlaneseq
    %v74 = vshrl.u32 %v73, 7
    %v75 = vsub.s32 0, %v74
    %v76 = vrot.slane %v71, %v75
    %vm78 = vcmask 523264
    %v80 = vsel %vm78, %v54, 0
    %82 = vmatprep.subr.mxu0 0.0
    %83 = vmatpush1.msra.mxu0 0.0
    %84 = vmatprep.subr.mxu0 0.0
    %85 = vmatpush1.msra.mxu0 0.0
    %86 = vmatprep.subr.mxu0 0.0
    %87 = vmatpush1.msra.mxu0 0.0
    %88 = vmatprep.subr.mxu0 0.0
    %89 = vmatpush1.msra.mxu0 0.0
    %90 = vmatprep.subr.mxu0 0.0
    %91 = vmatpush1.msra.mxu0 0.0
    %92 = vmatprep.subr.mxu0 0.0
    %93 = vmatpush1.msra.mxu0 0.0
    %94 = vmatprep.subr.mxu0 0.0
    %95 = vmatpush1.msra.mxu0 0.0
    %96 = vmatprep.subr.mxu0 0.0
    %97 = vmatpush1.msra.mxu0 0.0
    %98 = vmatprep.subr.mxu0 0.0
    %99 = vmatpush1.msra.mxu0 %v70
    %100 = vmatprep.subr.mxu0 0.0
    %101 = vmatpush1.msra.mxu0 %v69
    %102 = vmatprep.subr.mxu0 0.0
    %103 = vmatpush1.msra.mxu0 %v68
    %104 = vmatprep.subr.mxu0 0.0
    %105 = vmatpush1.msra.mxu0 %v67
    %106 = vmatprep.subr.mxu0 0.0
    %107 = vmatpush1.msra.mxu0 %v66
    %108 = vmatprep.subr.mxu0 0.0
    %109 = vmatpush1.msra.mxu0 %v65
    %110 = vmatprep.subr.mxu0 0.0
    %111 = vmatpush1.msra.mxu0 %v64
    %112 = vmatprep.subr.mxu0 0.0
    %113 = vmatpush1.msra.mxu0 %v63
    %114 = vmatprep.subr.mxu0 0.0
    %115 = vmatpush2.msra.mxu0 0.0
    %116 = vmatprep.subr.mxu0 0.0
    %117 = vmatpush2.msra.mxu0 0.0
    %118 = vmatprep.subr.mxu0 0.0
    %119 = vmatpush2.msra.mxu0 0.0
    %120 = vmatprep.subr.mxu0 0.0
    %121 = vmatpush2.msra.mxu0 0.0
    %122 = vmatprep.subr.mxu0 0.0
    %123 = vmatpush2.msra.mxu0 0.0
    %124 = vmatprep.subr.mxu0 0.0
    %125 = vmatpush2.msra.mxu0 0.0
    %126 = vmatprep.subr.mxu0 0.0
    %127 = vmatpush2.msra.mxu0 0.0
    %128 = vmatprep.subr.mxu0 0.0
    %129 = vmatpush2.msra.mxu0 0.0
    %130 = vmatprep.subr.mxu0 0.0
    %131 = vmatpush2.msra.mxu0 0.0
    %132 = vmatprep.subr.mxu0 0.0
    %133 = vmatpush2.msra.mxu0 0.0
    %134 = vmatprep.subr.mxu0 0.0
    %135 = vmatpush2.msra.mxu0 0.0
    %136 = vmatprep.subr.mxu0 0.0
    %137 = vmatpush2.msra.mxu0 0.0
    %138 = vmatprep.subr.mxu0 0.0
    %139 = vmatpush2.msra.mxu0 0.0
    %140 = vmatprep.subr.mxu0 0.0
    %141 = vmatpush2.msra.mxu0 0.0
    %142 = vmatprep.subr.mxu0 0.0
    %143 = vmatpush2.msra.mxu0 0.0
    %144 = vmatprep.subr.mxu0 0.0
    %145 = vmatpush2.msra.mxu0 0.0
    %146 = vmatprep.mubr.f32.mxu0 0.0
    %147 = vmatmul.mubr.f32.gmra.mxu0 %v80
    %v148 = vpop.f32.mrf.mxu0
    %v149 = vadd.f32 %v76, %v148
    %v150 = vpop.f32.mrf.mxu0
    %151 = vdwg.mxu0
    %v152 = vmax.f32 %v149, 0.0
    %vm153 = vcmask 60416
    %v154 = vsel %vm153, %v55, 0.0
    %155 = vadd.xlane.f32.xlu0 %v154
    %v156 = vpop.xlane.xlu0 %155
    %v157 = vsel %vm153, %v56, 0.0
    %158 = vadd.xlane.f32.xlu0 %v157
    %v159 = vpop.xlane.xlu0 %158
    %v160 = vsel %vm153, %v57, 0.0
    %161 = vadd.xlane.f32.xlu0 %v160
    %v162 = vpop.xlane.xlu0 %161
    %v163 = vsel %vm153, %v58, 0.0
    %164 = vadd.xlane.f32.xlu0 %v163
    %v165 = vpop.xlane.xlu0 %164
    %v166 = vsel %vm153, %v59, 0.0
    %167 = vadd.xlane.f32.xlu0 %v166
    %v168 = vpop.xlane.xlu0 %167
    %v169 = vsel %vm153, %v60, 0.0
    %170 = vadd.xlane.f32.xlu0 %v169
    %v171 = vpop.xlane.xlu0 %170
    %v172 = vsel %vm153, %v61, 0.0
    %173 = vadd.xlane.f32.xlu0 %v172
    %v174 = vpop.xlane.xlu0 %173
    %v175 = vsel %vm153, %v62, 0.0
    %176 = vadd.xlane.f32.xlu0 %v175
    %v177 = vpop.xlane.xlu0 %176
    %v178 = vld [vmem:[%s4] sm:$0xff]
    %v179 = vld [vmem:[%s4 + $0x8] sm:$0xff]
    %v180 = vld [vmem:[%s4 + $0x10] sm:$0xff]
    %v181 = vld [vmem:[%s4 + $0x18] sm:$0xff]
    %v182 = vld [vmem:[%s5] sm:$0x1]
    %v184 = vlaneseq
    %v185 = vshrl.u32 %v184, 7
    %v186 = vsub.s32 0, %v185
    %v187 = vrot.slane %v182, %v186
    %vm189 = vcmask 261120
    %v191 = vsel %vm189, %v152, 0
    %193 = vmatprep.subr.mxu0 0.0
    %194 = vmatpush1.msra.mxu0 0.0
    %195 = vmatprep.subr.mxu0 0.0
    %196 = vmatpush1.msra.mxu0 0.0
    %197 = vmatprep.subr.mxu0 0.0
    %198 = vmatpush1.msra.mxu0 0.0
    %199 = vmatprep.subr.mxu0 0.0
    %200 = vmatpush1.msra.mxu0 0.0
    %201 = vmatprep.subr.mxu0 0.0
    %202 = vmatpush1.msra.mxu0 0.0
    %203 = vmatprep.subr.mxu0 0.0
    %204 = vmatpush1.msra.mxu0 0.0
    %205 = vmatprep.subr.mxu0 0.0
    %206 = vmatpush1.msra.mxu0 0.0
    %207 = vmatprep.subr.mxu0 0.0
    %208 = vmatpush1.msra.mxu0 0.0
    %209 = vmatprep.subr.mxu0 0.0
    %210 = vmatpush1.msra.mxu0 0.0
    %211 = vmatprep.subr.mxu0 0.0
    %212 = vmatpush1.msra.mxu0 0.0
    %213 = vmatprep.subr.mxu0 0.0
    %214 = vmatpush1.msra.mxu0 0.0
    %215 = vmatprep.subr.mxu0 0.0
    %216 = vmatpush1.msra.mxu0 0.0
    %217 = vmatprep.subr.mxu0 0.0
    %218 = vmatpush1.msra.mxu0 %v181
    %219 = vmatprep.subr.mxu0 0.0
    %220 = vmatpush1.msra.mxu0 %v180
    %221 = vmatprep.subr.mxu0 0.0
    %222 = vmatpush1.msra.mxu0 %v179
    %223 = vmatprep.subr.mxu0 0.0
    %224 = vmatpush1.msra.mxu0 %v178
    %225 = vmatprep.subr.mxu0 0.0
    %226 = vmatpush2.msra.mxu0 0.0
    %227 = vmatprep.subr.mxu0 0.0
    %228 = vmatpush2.msra.mxu0 0.0
    %229 = vmatprep.subr.mxu0 0.0
    %230 = vmatpush2.msra.mxu0 0.0
    %231 = vmatprep.subr.mxu0 0.0
    %232 = vmatpush2.msra.mxu0 0.0
    %233 = vmatprep.subr.mxu0 0.0
    %234 = vmatpush2.msra.mxu0 0.0
    %235 = vmatprep.subr.mxu0 0.0
    %236 = vmatpush2.msra.mxu0 0.0
    %237 = vmatprep.subr.mxu0 0.0
    %238 = vmatpush2.msra.mxu0 0.0
    %239 = vmatprep.subr.mxu0 0.0
    %240 = vmatpush2.msra.mxu0 0.0
    %241 = vmatprep.subr.mxu0 0.0
    %242 = vmatpush2.msra.mxu0 0.0
    %243 = vmatprep.subr.mxu0 0.0
    %244 = vmatpush2.msra.mxu0 0.0
    %245 = vmatprep.subr.mxu0 0.0
    %246 = vmatpush2.msra.mxu0 0.0
    %247 = vmatprep.subr.mxu0 0.0
    %248 = vmatpush2.msra.mxu0 0.0
    %249 = vmatprep.subr.mxu0 0.0
    %250 = vmatpush2.msra.mxu0 0.0
    %251 = vmatprep.subr.mxu0 0.0
    %252 = vmatpush2.msra.mxu0 0.0
    %253 = vmatprep.subr.mxu0 0.0
    %254 = vmatpush2.msra.mxu0 0.0
    %255 = vmatprep.subr.mxu0 0.0
    %256 = vmatpush2.msra.mxu0 0.0
    %257 = vmatprep.mubr.f32.mxu0 0.0
    %258 = vmatmul.mubr.f32.gmra.mxu0 %v191
    %v259 = vpop.f32.mrf.mxu0
    %v260 = vadd.f32 %v187, %v259
    %v261 = vpop.f32.mrf.mxu0
    %262 = vdwg.mxu0
    %264 = vrot.lane.b32.xlu0 %v260, 96
    %v265 = vpop.permute.xlu0 %264
    %v267 = vmul.f32 %v260, %v265
    %v268 = vld [vmem:[%s6] sm:$0xff]
    %v269 = vld [vmem:[%s6 + $0x8] sm:$0xff]
    %v270 = vld [vmem:[%s6 + $0x10] sm:$0xff]
    %v271 = vld [vmem:[%s6 + $0x18] sm:$0xff]
    %v273 = vsel %vm189, %v267, 0
    %275 = vmatprep.subr.mxu0 0.0
    %276 = vmatpush1.msra.mxu0 0.0
    %277 = vmatprep.subr.mxu0 0.0
    %278 = vmatpush1.msra.mxu0 0.0
    %279 = vmatprep.subr.mxu0 0.0
    %280 = vmatpush1.msra.mxu0 0.0
    %281 = vmatprep.subr.mxu0 0.0
    %282 = vmatpush1.msra.mxu0 0.0
    %283 = vmatprep.subr.mxu0 0.0
    %284 = vmatpush1.msra.mxu0 0.0
    %285 = vmatprep.subr.mxu0 0.0
    %286 = vmatpush1.msra.mxu0 0.0
    %287 = vmatprep.subr.mxu0 0.0
    %288 = vmatpush1.msra.mxu0 0.0
    %289 = vmatprep.subr.mxu0 0.0
    %290 = vmatpush1.msra.mxu0 0.0
    %291 = vmatprep.subr.mxu0 0.0
    %292 = vmatpush1.msra.mxu0 0.0
    %293 = vmatprep.subr.mxu0 0.0
    %294 = vmatpush1.msra.mxu0 0.0
    %295 = vmatprep.subr.mxu0 0.0
    %296 = vmatpush1.msra.mxu0 0.0
    %297 = vmatprep.subr.mxu0 0.0
    %298 = vmatpush1.msra.mxu0 0.0
    %299 = vmatprep.subr.mxu0 0.0
    %300 = vmatpush1.msra.mxu0 %v271
    %301 = vmatprep.subr.mxu0 0.0
    %302 = vmatpush1.msra.mxu0 %v270
    %303 = vmatprep.subr.mxu0 0.0
    %304 = vmatpush1.msra.mxu0 %v269
    %305 = vmatprep.subr.mxu0 0.0
    %306 = vmatpush1.msra.mxu0 %v268
    %307 = vmatprep.subr.mxu0 0.0
    %308 = vmatpush2.msra.mxu0 0.0
    %309 = vmatprep.subr.mxu0 0.0
    %310 = vmatpush2.msra.mxu0 0.0
    %311 = vmatprep.subr.mxu0 0.0
    %312 = vmatpush2.msra.mxu0 0.0
    %313 = vmatprep.subr.mxu0 0.0
    %314 = vmatpush2.msra.mxu0 0.0
    %315 = vmatprep.subr.mxu0 0.0
    %316 = vmatpush2.msra.mxu0 0.0
    %317 = vmatprep.subr.mxu0 0.0
    %318 = vmatpush2.msra.mxu0 0.0
    %319 = vmatprep.subr.mxu0 0.0
    %320 = vmatpush2.msra.mxu0 0.0
    %321 = vmatprep.subr.mxu0 0.0
    %322 = vmatpush2.msra.mxu0 0.0
    %323 = vmatprep.subr.mxu0 0.0
    %324 = vmatpush2.msra.mxu0 0.0
    %325 = vmatprep.subr.mxu0 0.0
    %326 = vmatpush2.msra.mxu0 0.0
    %327 = vmatprep.subr.mxu0 0.0
    %328 = vmatpush2.msra.mxu0 0.0
    %329 = vmatprep.subr.mxu0 0.0
    %330 = vmatpush2.msra.mxu0 0.0
    %331 = vmatprep.subr.mxu0 0.0
    %332 = vmatpush2.msra.mxu0 0.0
    %333 = vmatprep.subr.mxu0 0.0
    %334 = vmatpush2.msra.mxu0 0.0
    %335 = vmatprep.subr.mxu0 0.0
    %336 = vmatpush2.msra.mxu0 0.0
    %337 = vmatprep.subr.mxu0 0.0
    %338 = vmatpush2.msra.mxu0 0.0
    %339 = vmatprep.mubr.f32.mxu0 0.0
    %340 = vmatmul.mubr.f32.gmra.mxu0 %v273
    %v341 = vpop.f32.mrf.mxu0
    %v342 = vadd.f32 0.0, %v341
    %v343 = vpop.f32.mrf.mxu0
    %344 = vdwg.mxu0
    %v345 = vlaneseq
    %v346 = vshrl.u32 %v345, 7
    %v347 = vsub.s32 0, %v346
    %v348 = vrot.slane %v342, %v347
    %350 = vbcast.lane.b32.xlu0 %v348, 256
    %v351 = vpop.permute.xlu0 %350
    %v352 = vlaneseq
    %v353 = vshrl.u32 %v352, 7
    %v354 = vsub.s32 1, %v353
    %v355 = vrot.slane %v342, %v354
    %357 = vbcast.lane.b32.xlu0 %v355, 256
    %v358 = vpop.permute.xlu0 %357
    %v359 = vlaneseq
    %v360 = vshrl.u32 %v359, 7
    %v361 = vsub.s32 2, %v360
    %v362 = vrot.slane %v342, %v361
    %364 = vbcast.lane.b32.xlu0 %v362, 256
    %v365 = vpop.permute.xlu0 %364
    %v366 = vlaneseq
    %v367 = vshrl.u32 %v366, 7
    %v368 = vsub.s32 3, %v367
    %v369 = vrot.slane %v342, %v368
    %371 = vbcast.lane.b32.xlu0 %v369, 256
    %v372 = vpop.permute.xlu0 %371
    %v373 = vlaneseq
    %v374 = vshrl.u32 %v373, 7
    %v375 = vsub.s32 4, %v374
    %v376 = vrot.slane %v342, %v375
    %378 = vbcast.lane.b32.xlu0 %v376, 256
    %v379 = vpop.permute.xlu0 %378
    %v380 = vlaneseq
    %v381 = vshrl.u32 %v380, 7
    %v382 = vsub.s32 5, %v381
    %v383 = vrot.slane %v342, %v382
    %385 = vbcast.lane.b32.xlu0 %v383, 256
    %v386 = vpop.permute.xlu0 %385
    %v387 = vlaneseq
    %v388 = vshrl.u32 %v387, 7
    %v389 = vsub.s32 6, %v388
    %v390 = vrot.slane %v342, %v389
    %392 = vbcast.lane.b32.xlu0 %v390, 256
    %v393 = vpop.permute.xlu0 %392
    %v394 = vlaneseq
    %v395 = vshrl.u32 %v394, 7
    %v396 = vsub.s32 7, %v395
    %v397 = vrot.slane %v342, %v396
    %399 = vbcast.lane.b32.xlu0 %v397, 256
    %v400 = vpop.permute.xlu0 %399
    %v409 = vlaneseq
    %v410 = vand.u32 %v409, 127
    %v411 = vlaneseq
    %v412 = vshrl.u32 %v411, 7
    %v413 = vsub.s32 %v410, %v412
    %v414 = vrot.slane %v156, %v413
    %v415 = vlaneseq
    %v416 = vshrl.u32 %v415, 7
    %v417 = vsub.s32 %v410, %v416
    %v418 = vrot.slane %v159, %v417
    %v419 = vlaneseq
    %v420 = vshrl.u32 %v419, 7
    %v421 = vsub.s32 %v410, %v420
    %v422 = vrot.slane %v162, %v421
    %v423 = vlaneseq
    %v424 = vshrl.u32 %v423, 7
    %v425 = vsub.s32 %v410, %v424
    %v426 = vrot.slane %v165, %v425
    %v427 = vlaneseq
    %v428 = vshrl.u32 %v427, 7
    %v429 = vsub.s32 %v410, %v428
    %v430 = vrot.slane %v168, %v429
    %v431 = vlaneseq
    %v432 = vshrl.u32 %v431, 7
    %v433 = vsub.s32 %v410, %v432
    %v434 = vrot.slane %v171, %v433
    %v435 = vlaneseq
    %v436 = vshrl.u32 %v435, 7
    %v437 = vsub.s32 %v410, %v436
    %v438 = vrot.slane %v174, %v437
    %v439 = vlaneseq
    %v440 = vshrl.u32 %v439, 7
    %v441 = vsub.s32 %v410, %v440
    %v442 = vrot.slane %v177, %v441
    %vm443 = vcmask 1041409
    %vm444 = vcmask 1042434
    %v445 = vsel %vm444, %v414, %v414
    %vm446 = vcmask 1043459
    %v447 = vsel %vm446, %v414, %v445
    %v448 = vsel %vm444, %v418, %v418
    %v449 = vsel %vm446, %v418, %v448
    %v450 = vsel %vm444, %v422, %v422
    %v451 = vsel %vm446, %v422, %v450
    %v452 = vsel %vm444, %v426, %v426
    %v453 = vsel %vm446, %v426, %v452
    %v454 = vsel %vm444, %v430, %v430
    %v455 = vsel %vm446, %v430, %v454
    %v456 = vsel %vm444, %v434, %v434
    %v457 = vsel %vm446, %v434, %v456
    %v458 = vsel %vm444, %v438, %v438
    %v459 = vsel %vm446, %v438, %v458
    %v460 = vsel %vm444, %v442, %v442
    %v461 = vsel %vm446, %v442, %v460
    %v470 = vmul.f32 %v351, %v447
    %v471 = vmul.f32 %v358, %v449
    %v472 = vmul.f32 %v365, %v451
    %v473 = vmul.f32 %v372, %v453
    %v474 = vmul.f32 %v379, %v455
    %v475 = vmul.f32 %v386, %v457
    %v476 = vmul.f32 %v393, %v459
    %v477 = vmul.f32 %v400, %v461
    %vm478 = vcmask 27648
    %v479 = vsel %vm478, %v470, -inf
    %480 = vmax.xlane.f32.xlu0 %v479
    %v481 = vpop.xlane.xlu0 %480
    %v482 = vsel %vm478, %v471, -inf
    %483 = vmax.xlane.f32.xlu0 %v482
    %v484 = vpop.xlane.xlu0 %483
    %v485 = vsel %vm478, %v472, -inf
    %486 = vmax.xlane.f32.xlu0 %v485
    %v487 = vpop.xlane.xlu0 %486
    %v488 = vsel %vm478, %v473, -inf
    %489 = vmax.xlane.f32.xlu0 %v488
    %v490 = vpop.xlane.xlu0 %489
    %v491 = vsel %vm478, %v474, -inf
    %492 = vmax.xlane.f32.xlu0 %v491
    %v493 = vpop.xlane.xlu0 %492
    %v494 = vsel %vm478, %v475, -inf
    %495 = vmax.xlane.f32.xlu0 %v494
    %v496 = vpop.xlane.xlu0 %495
    %v497 = vsel %vm478, %v476, -inf
    %498 = vmax.xlane.f32.xlu0 %v497
    %v499 = vpop.xlane.xlu0 %498
    %v500 = vsel %vm478, %v477, -inf
    %501 = vmax.xlane.f32.xlu0 %v500
    %v502 = vpop.xlane.xlu0 %501
    %v503 = vsub.f32 %v470, %v481
    %v504 = vsub.f32 %v471, %v484
    %v505 = vsub.f32 %v472, %v487
    %v506 = vsub.f32 %v473, %v490
    %v507 = vsub.f32 %v474, %v493
    %v508 = vsub.f32 %v475, %v496
    %v509 = vsub.f32 %v476, %v499
    %v510 = vsub.f32 %v477, %v502
    %v511 = vmul.f32 %v503, 1.442695
    %v512 = vpow.pop %v511
    %v513 = vmul.f32 %v504, 1.442695
    %v514 = vpow.pop %v513
    %v515 = vmul.f32 %v505, 1.442695
    %v516 = vpow.pop %v515
    %v517 = vmul.f32 %v506, 1.442695
    %v518 = vpow.pop %v517
    %v519 = vmul.f32 %v507, 1.442695
    %v520 = vpow.pop %v519
    %v521 = vmul.f32 %v508, 1.442695
    %v522 = vpow.pop %v521
    %v523 = vmul.f32 %v509, 1.442695
    %v524 = vpow.pop %v523
    %v525 = vmul.f32 %v510, 1.442695
    %v526 = vpow.pop %v525
    %v527 = vsel %vm478, %v512, 0.0
    %528 = vadd.xlane.f32.xlu0 %v527
    %v529 = vpop.xlane.xlu0 %528
    %v530 = vsel %vm478, %v514, 0.0
    %531 = vadd.xlane.f32.xlu0 %v530
    %v532 = vpop.xlane.xlu0 %531
    %v533 = vsel %vm478, %v516, 0.0
    %534 = vadd.xlane.f32.xlu0 %v533
    %v535 = vpop.xlane.xlu0 %534
    %v536 = vsel %vm478, %v518, 0.0
    %537 = vadd.xlane.f32.xlu0 %v536
    %v538 = vpop.xlane.xlu0 %537
    %v539 = vsel %vm478, %v520, 0.0
    %540 = vadd.xlane.f32.xlu0 %v539
    %v541 = vpop.xlane.xlu0 %540
    %v542 = vsel %vm478, %v522, 0.0
    %543 = vadd.xlane.f32.xlu0 %v542
    %v544 = vpop.xlane.xlu0 %543
    %v545 = vsel %vm478, %v524, 0.0
    %546 = vadd.xlane.f32.xlu0 %v545
    %v547 = vpop.xlane.xlu0 %546
    %v548 = vsel %vm478, %v526, 0.0
    %549 = vadd.xlane.f32.xlu0 %v548
    %v550 = vpop.xlane.xlu0 %549
    %v551 = vmul.f32 %v512, %v447
    %v552 = vmul.f32 %v514, %v449
    %v553 = vmul.f32 %v516, %v451
    %v554 = vmul.f32 %v518, %v453
    %v555 = vmul.f32 %v520, %v455
    %v556 = vmul.f32 %v522, %v457
    %v557 = vmul.f32 %v524, %v459
    %v558 = vmul.f32 %v526, %v461
    %v559 = vsel %vm478, %v551, 0.0
    %560 = vadd.xlane.f32.xlu0 %v559
    %v561 = vpop.xlane.xlu0 %560
    %v562 = vsel %vm478, %v552, 0.0
    %563 = vadd.xlane.f32.xlu0 %v562
    %v564 = vpop.xlane.xlu0 %563
    %v565 = vsel %vm478, %v553, 0.0
    %566 = vadd.xlane.f32.xlu0 %v565
    %v567 = vpop.xlane.xlu0 %566
    %v568 = vsel %vm478, %v554, 0.0
    %569 = vadd.xlane.f32.xlu0 %v568
    %v570 = vpop.xlane.xlu0 %569
    %v571 = vsel %vm478, %v555, 0.0
    %572 = vadd.xlane.f32.xlu0 %v571
    %v573 = vpop.xlane.xlu0 %572
    %v574 = vsel %vm478, %v556, 0.0
    %575 = vadd.xlane.f32.xlu0 %v574
    %v576 = vpop.xlane.xlu0 %575
    %v577 = vsel %vm478, %v557, 0.0
    %578 = vadd.xlane.f32.xlu0 %v577
    %v579 = vpop.xlane.xlu0 %578
    %v580 = vsel %vm478, %v558, 0.0
    %581 = vadd.xlane.f32.xlu0 %v580
    %v582 = vpop.xlane.xlu0 %581
    %v583 = vrcp.pop %v529
    %v584 = vrcp.pop %v532
    %v585 = vrcp.pop %v535
    %v586 = vrcp.pop %v538
    %v587 = vrcp.pop %v541
    %v588 = vrcp.pop %v544
    %v589 = vrcp.pop %v547
    %v590 = vrcp.pop %v550
    %v591 = vmul.f32 %v561, %v583
    %v592 = vmul.f32 %v564, %v584
    %v593 = vmul.f32 %v567, %v585
    %v594 = vmul.f32 %v570, %v586
    %v595 = vmul.f32 %v573, %v587
    %v596 = vmul.f32 %v576, %v588
    %v597 = vmul.f32 %v579, %v589
    %v598 = vmul.f32 %v582, %v590
    %v599 = vld [vmem:[%s7] sm:$0xf]
    %v608 = vlaneseq
    %v609 = vshrl.u32 %v608, 7
    %v610 = vsub.s32 %v410, %v609
    %v611 = vrot.slane %v591, %v610
    %v612 = vlaneseq
    %v613 = vshrl.u32 %v612, 7
    %v614 = vsub.s32 %v410, %v613
    %v615 = vrot.slane %v592, %v614
    %v616 = vlaneseq
    %v617 = vshrl.u32 %v616, 7
    %v618 = vsub.s32 %v410, %v617
    %v619 = vrot.slane %v593, %v618
    %v620 = vlaneseq
    %v621 = vshrl.u32 %v620, 7
    %v622 = vsub.s32 %v410, %v621
    %v623 = vrot.slane %v594, %v622
    %v624 = vlaneseq
    %v625 = vshrl.u32 %v624, 7
    %v626 = vsub.s32 %v410, %v625
    %v627 = vrot.slane %v595, %v626
    %v628 = vlaneseq
    %v629 = vshrl.u32 %v628, 7
    %v630 = vsub.s32 %v410, %v629
    %v631 = vrot.slane %v596, %v630
    %v632 = vlaneseq
    %v633 = vshrl.u32 %v632, 7
    %v634 = vsub.s32 %v410, %v633
    %v635 = vrot.slane %v597, %v634
    %v636 = vlaneseq
    %v637 = vshrl.u32 %v636, 7
    %v638 = vsub.s32 %v410, %v637
    %v639 = vrot.slane %v598, %v638
    %v640 = vsel %vm443, %v615, %v611
    %v641 = vsel %vm444, %v619, %v640
    %v642 = vsel %vm446, %v623, %v641
    %vm643 = vcmask 1044484
    %v644 = vsel %vm643, %v627, %v642
    %vm645 = vcmask 1045509
    %v646 = vsel %vm645, %v631, %v644
    %vm647 = vcmask 1046534
    %v648 = vsel %vm647, %v635, %v646
    %vm649 = vcmask 1047559
    %v650 = vsel %vm649, %v639, %v648
    %vm651 = vcmask 31744
    %v652 = vsel %vm651, %v650, 0
    %vm654 = vcmask 1043456
    %v656 = vsel %vm654, %v599, 0
    %658 = vmatprep.subr.mxu0 0.0
    %659 = vmatpush1.msra.mxu0 0.0
    %660 = vmatprep.subr.mxu0 0.0
    %661 = vmatpush1.msra.mxu0 0.0
    %662 = vmatprep.subr.mxu0 0.0
    %663 = vmatpush1.msra.mxu0 0.0
    %664 = vmatprep.subr.mxu0 0.0
    %665 = vmatpush1.msra.mxu0 0.0
    %666 = vmatprep.subr.mxu0 0.0
    %667 = vmatpush1.msra.mxu0 0.0
    %668 = vmatprep.subr.mxu0 0.0
    %669 = vmatpush1.msra.mxu0 0.0
    %670 = vmatprep.subr.mxu0 0.0
    %671 = vmatpush1.msra.mxu0 0.0
    %672 = vmatprep.subr.mxu0 0.0
    %673 = vmatpush1.msra.mxu0 0.0
    %674 = vmatprep.subr.mxu0 0.0
    %675 = vmatpush1.msra.mxu0 0.0
    %676 = vmatprep.subr.mxu0 0.0
    %677 = vmatpush1.msra.mxu0 0.0
    %678 = vmatprep.subr.mxu0 0.0
    %679 = vmatpush1.msra.mxu0 0.0
    %680 = vmatprep.subr.mxu0 0.0
    %681 = vmatpush1.msra.mxu0 0.0
    %682 = vmatprep.subr.mxu0 0.0
    %683 = vmatpush1.msra.mxu0 0.0
    %684 = vmatprep.subr.mxu0 0.0
    %685 = vmatpush1.msra.mxu0 0.0
    %686 = vmatprep.subr.mxu0 0.0
    %687 = vmatpush1.msra.mxu0 0.0
    %688 = vmatprep.subr.mxu0 0.0
    %689 = vmatpush1.msra.mxu0 %v656
    %690 = vmatprep.subr.mxu0 0.0
    %691 = vmatpush2.msra.mxu0 0.0
    %692 = vmatprep.subr.mxu0 0.0
    %693 = vmatpush2.msra.mxu0 0.0
    %694 = vmatprep.subr.mxu0 0.0
    %695 = vmatpush2.msra.mxu0 0.0
    %696 = vmatprep.subr.mxu0 0.0
    %697 = vmatpush2.msra.mxu0 0.0
    %698 = vmatprep.subr.mxu0 0.0
    %699 = vmatpush2.msra.mxu0 0.0
    %700 = vmatprep.subr.mxu0 0.0
    %701 = vmatpush2.msra.mxu0 0.0
    %702 = vmatprep.subr.mxu0 0.0
    %703 = vmatpush2.msra.mxu0 0.0
    %704 = vmatprep.subr.mxu0 0.0
    %705 = vmatpush2.msra.mxu0 0.0
    %706 = vmatprep.subr.mxu0 0.0
    %707 = vmatpush2.msra.mxu0 0.0
    %708 = vmatprep.subr.mxu0 0.0
    %709 = vmatpush2.msra.mxu0 0.0
    %710 = vmatprep.subr.mxu0 0.0
    %711 = vmatpush2.msra.mxu0 0.0
    %712 = vmatprep.subr.mxu0 0.0
    %713 = vmatpush2.msra.mxu0 0.0
    %714 = vmatprep.subr.mxu0 0.0
    %715 = vmatpush2.msra.mxu0 0.0
    %716 = vmatprep.subr.mxu0 0.0
    %717 = vmatpush2.msra.mxu0 0.0
    %718 = vmatprep.subr.mxu0 0.0
    %719 = vmatpush2.msra.mxu0 0.0
    %720 = vmatprep.subr.mxu0 0.0
    %721 = vmatpush2.msra.mxu0 0.0
    %722 = vmatprep.mubr.f32.mxu0 0.0
    %723 = vmatmul.mubr.f32.gmra.mxu0 %v652
    %v724 = vpop.f32.mrf.mxu0
    %v725 = vadd.f32 0.0, %v724
    %v726 = vpop.f32.mrf.mxu0
    %727 = vdwg.mxu0
    %728 = vrot.lane.b32.xlu0 %v260, 64
    %v729 = vpop.permute.xlu0 %728
    %v731 = vmul.f32 %v725, %v729
    %v732 = vld [vmem:[%s8] sm:$0xff]
    %v733 = vld [vmem:[%s8 + $0x8] sm:$0xff]
    %v734 = vld [vmem:[%s8 + $0x10] sm:$0xff]
    %v735 = vld [vmem:[%s8 + $0x18] sm:$0xff]
    %v736 = vld [vmem:[%s9] sm:$0x1]
    %v738 = vlaneseq
    %v739 = vshrl.u32 %v738, 7
    %v740 = vsub.s32 0, %v739
    %v741 = vrot.slane %v736, %v740
    %v744 = vsel %vm189, %v731, 0
    %746 = vmatprep.subr.mxu0 0.0
    %747 = vmatpush1.msra.mxu0 0.0
    %748 = vmatprep.subr.mxu0 0.0
    %749 = vmatpush1.msra.mxu0 0.0
    %750 = vmatprep.subr.mxu0 0.0
    %751 = vmatpush1.msra.mxu0 0.0
    %752 = vmatprep.subr.mxu0 0.0
    %753 = vmatpush1.msra.mxu0 0.0
    %754 = vmatprep.subr.mxu0 0.0
    %755 = vmatpush1.msra.mxu0 0.0
    %756 = vmatprep.subr.mxu0 0.0
    %757 = vmatpush1.msra.mxu0 0.0
    %758 = vmatprep.subr.mxu0 0.0
    %759 = vmatpush1.msra.mxu0 0.0
    %760 = vmatprep.subr.mxu0 0.0
    %761 = vmatpush1.msra.mxu0 0.0
    %762 = vmatprep.subr.mxu0 0.0
    %763 = vmatpush1.msra.mxu0 0.0
    %764 = vmatprep.subr.mxu0 0.0
    %765 = vmatpush1.msra.mxu0 0.0
    %766 = vmatprep.subr.mxu0 0.0
    %767 = vmatpush1.msra.mxu0 0.0
    %768 = vmatprep.subr.mxu0 0.0
    %769 = vmatpush1.msra.mxu0 0.0
    %770 = vmatprep.subr.mxu0 0.0
    %771 = vmatpush1.msra.mxu0 %v735
    %772 = vmatprep.subr.mxu0 0.0
    %773 = vmatpush1.msra.mxu0 %v734
    %774 = vmatprep.subr.mxu0 0.0
    %775 = vmatpush1.msra.mxu0 %v733
    %776 = vmatprep.subr.mxu0 0.0
    %777 = vmatpush1.msra.mxu0 %v732
    %778 = vmatprep.subr.mxu0 0.0
    %779 = vmatpush2.msra.mxu0 0.0
    %780 = vmatprep.subr.mxu0 0.0
    %781 = vmatpush2.msra.mxu0 0.0
    %782 = vmatprep.subr.mxu0 0.0
    %783 = vmatpush2.msra.mxu0 0.0
    %784 = vmatprep.subr.mxu0 0.0
    %785 = vmatpush2.msra.mxu0 0.0
    %786 = vmatprep.subr.mxu0 0.0
    %787 = vmatpush2.msra.mxu0 0.0
    %788 = vmatprep.subr.mxu0 0.0
    %789 = vmatpush2.msra.mxu0 0.0
    %790 = vmatprep.subr.mxu0 0.0
    %791 = vmatpush2.msra.mxu0 0.0
    %792 = vmatprep.subr.mxu0 0.0
    %793 = vmatpush2.msra.mxu0 0.0
    %794 = vmatprep.subr.mxu0 0.0
    %795 = vmatpush2.msra.mxu0 0.0
    %796 = vmatprep.subr.mxu0 0.0
    %797 = vmatpush2.msra.mxu0 0.0
    %798 = vmatprep.subr.mxu0 0.0
    %799 = vmatpush2.msra.mxu0 0.0
    %800 = vmatprep.subr.mxu0 0.0
    %801 = vmatpush2.msra.mxu0 0.0
    %802 = vmatprep.subr.mxu0 0.0
    %803 = vmatpush2.msra.mxu0 0.0
    %804 = vmatprep.subr.mxu0 0.0
    %805 = vmatpush2.msra.mxu0 0.0
    %806 = vmatprep.subr.mxu0 0.0
    %807 = vmatpush2.msra.mxu0 0.0
    %808 = vmatprep.subr.mxu0 0.0
    %809 = vmatpush2.msra.mxu0 0.0
    %810 = vmatprep.mubr.f32.mxu0 0.0
    %811 = vmatmul.mubr.f32.gmra.mxu0 %v744
    %v812 = vpop.f32.mrf.mxu0
    %v813 = vadd.f32 %v741, %v812
    %v814 = vpop.f32.mrf.mxu0
    %815 = vdwg.mxu0
    %v816 = vld [vmem:[%s10] sm:$0xff]
    %v817 = vld [vmem:[%s10 + $0x8] sm:$0xff]
    %v818 = vld [vmem:[%s10 + $0x10] sm:$0xff]
    %v819 = vld [vmem:[%s10 + $0x18] sm:$0xff]
    %v820 = vld [vmem:[%s11] sm:$0x1]
    %v822 = vlaneseq
    %v823 = vshrl.u32 %v822, 7
    %v824 = vsub.s32 0, %v823
    %v825 = vrot.slane %v820, %v824
    %v828 = vsel %vm189, %v813, 0
    %830 = vmatprep.subr.mxu0 0.0
    %831 = vmatpush1.msra.mxu0 0.0
    %832 = vmatprep.subr.mxu0 0.0
    %833 = vmatpush1.msra.mxu0 0.0
    %834 = vmatprep.subr.mxu0 0.0
    %835 = vmatpush1.msra.mxu0 0.0
    %836 = vmatprep.subr.mxu0 0.0
    %837 = vmatpush1.msra.mxu0 0.0
    %838 = vmatprep.subr.mxu0 0.0
    %839 = vmatpush1.msra.mxu0 0.0
    %840 = vmatprep.subr.mxu0 0.0
    %841 = vmatpush1.msra.mxu0 0.0
    %842 = vmatprep.subr.mxu0 0.0
    %843 = vmatpush1.msra.mxu0 0.0
    %844 = vmatprep.subr.mxu0 0.0
    %845 = vmatpush1.msra.mxu0 0.0
    %846 = vmatprep.subr.mxu0 0.0
    %847 = vmatpush1.msra.mxu0 0.0
    %848 = vmatprep.subr.mxu0 0.0
    %849 = vmatpush1.msra.mxu0 0.0
    %850 = vmatprep.subr.mxu0 0.0
    %851 = vmatpush1.msra.mxu0 0.0
    %852 = vmatprep.subr.mxu0 0.0
    %853 = vmatpush1.msra.mxu0 0.0
    %854 = vmatprep.subr.mxu0 0.0
    %855 = vmatpush1.msra.mxu0 %v819
    %856 = vmatprep.subr.mxu0 0.0
    %857 = vmatpush1.msra.mxu0 %v818
    %858 = vmatprep.subr.mxu0 0.0
    %859 = vmatpush1.msra.mxu0 %v817
    %860 = vmatprep.subr.mxu0 0.0
    %861 = vmatpush1.msra.mxu0 %v816
    %862 = vmatprep.subr.mxu0 0.0
    %863 = vmatpush2.msra.mxu0 0.0
    %864 = vmatprep.subr.mxu0 0.0
    %865 = vmatpush2.msra.mxu0 0.0
    %866 = vmatprep.subr.mxu0 0.0
    %867 = vmatpush2.msra.mxu0 0.0
    %868 = vmatprep.subr.mxu0 0.0
    %869 = vmatpush2.msra.mxu0 0.0
    %870 = vmatprep.subr.mxu0 0.0
    %871 = vmatpush2.msra.mxu0 0.0
    %872 = vmatprep.subr.mxu0 0.0
    %873 = vmatpush2.msra.mxu0 0.0
    %874 = vmatprep.subr.mxu0 0.0
    %875 = vmatpush2.msra.mxu0 0.0
    %876 = vmatprep.subr.mxu0 0.0
    %877 = vmatpush2.msra.mxu0 0.0
    %878 = vmatprep.subr.mxu0 0.0
    %879 = vmatpush2.msra.mxu0 0.0
    %880 = vmatprep.subr.mxu0 0.0
    %881 = vmatpush2.msra.mxu0 0.0
    %882 = vmatprep.subr.mxu0 0.0
    %883 = vmatpush2.msra.mxu0 0.0
    %884 = vmatprep.subr.mxu0 0.0
    %885 = vmatpush2.msra.mxu0 0.0
    %886 = vmatprep.subr.mxu0 0.0
    %887 = vmatpush2.msra.mxu0 0.0
    %888 = vmatprep.subr.mxu0 0.0
    %889 = vmatpush2.msra.mxu0 0.0
    %890 = vmatprep.subr.mxu0 0.0
    %891 = vmatpush2.msra.mxu0 0.0
    %892 = vmatprep.subr.mxu0 0.0
    %893 = vmatpush2.msra.mxu0 0.0
    %894 = vmatprep.mubr.f32.mxu0 0.0
    %895 = vmatmul.mubr.f32.gmra.mxu0 %v828
    %v896 = vpop.f32.mrf.mxu0
    %v897 = vadd.f32 %v825, %v896
    %v898 = vpop.f32.mrf.mxu0
    %899 = vdwg.mxu0
    %v900 = vld [vmem:[%s12] sm:$0xff]
    %v901 = vld [vmem:[%s12 + $0x8] sm:$0xff]
    %v902 = vld [vmem:[%s12 + $0x10] sm:$0xff]
    %v903 = vld [vmem:[%s12 + $0x18] sm:$0xff]
    %v904 = vld [vmem:[%s13] sm:$0xff]
    %v905 = vld [vmem:[%s13 + $0x8] sm:$0xff]
    %v906 = vld [vmem:[%s13 + $0x10] sm:$0xff]
    %v907 = vld [vmem:[%s13 + $0x18] sm:$0xff]
    %908 = vmatprep.subr.mxu0 0.0
    %909 = vmatpush1.msra.mxu0 0.0
    %910 = vmatprep.subr.mxu0 0.0
    %911 = vmatpush1.msra.mxu0 0.0
    %912 = vmatprep.subr.mxu0 0.0
    %913 = vmatpush1.msra.mxu0 0.0
    %914 = vmatprep.subr.mxu0 0.0
    %915 = vmatpush1.msra.mxu0 0.0
    %916 = vmatprep.subr.mxu0 0.0
    %917 = vmatpush1.msra.mxu0 0.0
    %918 = vmatprep.subr.mxu0 0.0
    %919 = vmatpush1.msra.mxu0 0.0
    %920 = vmatprep.subr.mxu0 0.0
    %921 = vmatpush1.msra.mxu0 0.0
    %922 = vmatprep.subr.mxu0 0.0
    %923 = vmatpush1.msra.mxu0 0.0
    %924 = vmatprep.subr.mxu0 0.0
    %925 = vmatpush1.msra.mxu0 0.0
    %926 = vmatprep.subr.mxu0 0.0
    %927 = vmatpush1.msra.mxu0 0.0
    %928 = vmatprep.subr.mxu0 0.0
    %929 = vmatpush1.msra.mxu0 0.0
    %930 = vmatprep.subr.mxu0 0.0
    %931 = vmatpush1.msra.mxu0 0.0
    %932 = vmatprep.subr.mxu0 0.0
    %933 = vmatpush1.msra.mxu0 %v907
    %934 = vmatprep.subr.mxu0 0.0
    %935 = vmatpush1.msra.mxu0 %v906
    %936 = vmatprep.subr.mxu0 0.0
    %937 = vmatpush1.msra.mxu0 %v905
    %938 = vmatprep.subr.mxu0 0.0
    %939 = vmatpush1.msra.mxu0 %v904
    %940 = vmatprep.subr.mxu0 0.0
    %941 = vmatpush2.msra.mxu0 0.0
    %942 = vmatprep.subr.mxu0 0.0
    %943 = vmatpush2.msra.mxu0 0.0
    %944 = vmatprep.subr.mxu0 0.0
    %945 = vmatpush2.msra.mxu0 0.0
    %946 = vmatprep.subr.mxu0 0.0
    %947 = vmatpush2.msra.mxu0 0.0
    %948 = vmatprep.subr.mxu0 0.0
    %949 = vmatpush2.msra.mxu0 0.0
    %950 = vmatprep.subr.mxu0 0.0
    %951 = vmatpush2.msra.mxu0 0.0
    %952 = vmatprep.subr.mxu0 0.0
    %953 = vmatpush2.msra.mxu0 0.0
    %954 = vmatprep.subr.mxu0 0.0
    %955 = vmatpush2.msra.mxu0 0.0
    %956 = vmatprep.subr.mxu0 0.0
    %957 = vmatpush2.msra.mxu0 0.0
    %958 = vmatprep.subr.mxu0 0.0
    %959 = vmatpush2.msra.mxu0 0.0
    %960 = vmatprep.subr.mxu0 0.0
    %961 = vmatpush2.msra.mxu0 0.0
    %962 = vmatprep.subr.mxu0 0.0
    %963 = vmatpush2.msra.mxu0 0.0
    %964 = vmatprep.subr.mxu0 0.0
    %965 = vmatpush2.msra.mxu0 0.0
    %966 = vmatprep.subr.mxu0 0.0
    %967 = vmatpush2.msra.mxu0 0.0
    %968 = vmatprep.subr.mxu0 0.0
    %969 = vmatpush2.msra.mxu0 0.0
    %970 = vmatprep.subr.mxu0 0.0
    %971 = vmatpush2.msra.mxu0 0.0
    %972 = vmatprep.mubr.f32.mxu0 0.0
    %973 = vmatmul.mubr.f32.gmra.mxu0 %v828
    %v974 = vpop.f32.mrf.mxu0
    %v975 = vadd.f32 0.0, %v974
    %v976 = vpop.f32.mrf.mxu0
    %977 = vdwg.mxu0
    %978 = vmatprep.subr.mxu0 0.0
    %979 = vmatpush1.msra.mxu0 0.0
    %980 = vmatprep.subr.mxu0 0.0
    %981 = vmatpush1.msra.mxu0 0.0
    %982 = vmatprep.subr.mxu0 0.0
    %983 = vmatpush1.msra.mxu0 0.0
    %984 = vmatprep.subr.mxu0 0.0
    %985 = vmatpush1.msra.mxu0 0.0
    %986 = vmatprep.subr.mxu0 0.0
    %987 = vmatpush1.msra.mxu0 0.0
    %988 = vmatprep.subr.mxu0 0.0
    %989 = vmatpush1.msra.mxu0 0.0
    %990 = vmatprep.subr.mxu0 0.0
    %991 = vmatpush1.msra.mxu0 0.0
    %992 = vmatprep.subr.mxu0 0.0
    %993 = vmatpush1.msra.mxu0 0.0
    %994 = vmatprep.subr.mxu0 0.0
    %995 = vmatpush1.msra.mxu0 0.0
    %996 = vmatprep.subr.mxu0 0.0
    %997 = vmatpush1.msra.mxu0 0.0
    %998 = vmatprep.subr.mxu0 0.0
    %999 = vmatpush1.msra.mxu0 0.0
    %1000 = vmatprep.subr.mxu0 0.0
    %1001 = vmatpush1.msra.mxu0 0.0
    %1002 = vmatprep.subr.mxu0 0.0
    %1003 = vmatpush1.msra.mxu0 %v903
    %1004 = vmatprep.subr.mxu0 0.0
    %1005 = vmatpush1.msra.mxu0 %v902
    %1006 = vmatprep.subr.mxu0 0.0
    %1007 = vmatpush1.msra.mxu0 %v901
    %1008 = vmatprep.subr.mxu0 0.0
    %1009 = vmatpush1.msra.mxu0 %v900
    %1010 = vmatprep.subr.mxu0 0.0
    %1011 = vmatpush2.msra.mxu0 0.0
    %1012 = vmatprep.subr.mxu0 0.0
    %1013 = vmatpush2.msra.mxu0 0.0
    %1014 = vmatprep.subr.mxu0 0.0
    %1015 = vmatpush2.msra.mxu0 0.0
    %1016 = vmatprep.subr.mxu0 0.0
    %1017 = vmatpush2.msra.mxu0 0.0
    %1018 = vmatprep.subr.mxu0 0.0
    %1019 = vmatpush2.msra.mxu0 0.0
    %1020 = vmatprep.subr.mxu0 0.0
    %1021 = vmatpush2.msra.mxu0 0.0
    %1022 = vmatprep.subr.mxu0 0.0
    %1023 = vmatpush2.msra.mxu0 0.0
    %1024 = vmatprep.subr.mxu0 0.0
    %1025 = vmatpush2.msra.mxu0 0.0
    %1026 = vmatprep.subr.mxu0 0.0
    %1027 = vmatpush2.msra.mxu0 0.0
    %1028 = vmatprep.subr.mxu0 0.0
    %1029 = vmatpush2.msra.mxu0 0.0
    %1030 = vmatprep.subr.mxu0 0.0
    %1031 = vmatpush2.msra.mxu0 0.0
    %1032 = vmatprep.subr.mxu0 0.0
    %1033 = vmatpush2.msra.mxu0 0.0
    %1034 = vmatprep.subr.mxu0 0.0
    %1035 = vmatpush2.msra.mxu0 0.0
    %1036 = vmatprep.subr.mxu0 0.0
    %1037 = vmatpush2.msra.mxu0 0.0
    %1038 = vmatprep.subr.mxu0 0.0
    %1039 = vmatpush2.msra.mxu0 0.0
    %1040 = vmatprep.subr.mxu0 0.0
    %1041 = vmatpush2.msra.mxu0 0.0
    %1042 = vmatprep.mubr.f32.mxu0 0.0
    %1043 = vmatmul.mubr.f32.gmra.mxu0 %v191
    %v1044 = vpop.f32.mrf.mxu0
    %v1045 = vadd.f32 %v975, %v1044
    %v1046 = vpop.f32.mrf.mxu0
    %1047 = vdwg.mxu0
    %v1048 = vld [vmem:[%s14] sm:$0xff]
    %v1049 = vld [vmem:[%s14 + $0x8] sm:$0xff]
    %v1050 = vld [vmem:[%s14 + $0x10] sm:$0xff]
    %v1051 = vld [vmem:[%s14 + $0x18] sm:$0xff]
    %v1053 = vsel %vm189, %v897, 0
    %1055 = vmatprep.subr.mxu0 0.0
    %1056 = vmatpush1.msra.mxu0 0.0
    %1057 = vmatprep.subr.mxu0 0.0
    %1058 = vmatpush1.msra.mxu0 0.0
    %1059 = vmatprep.subr.mxu0 0.0
    %1060 = vmatpush1.msra.mxu0 0.0
    %1061 = vmatprep.subr.mxu0 0.0
    %1062 = vmatpush1.msra.mxu0 0.0
    %1063 = vmatprep.subr.mxu0 0.0
    %1064 = vmatpush1.msra.mxu0 0.0
    %1065 = vmatprep.subr.mxu0 0.0
    %1066 = vmatpush1.msra.mxu0 0.0
    %1067 = vmatprep.subr.mxu0 0.0
    %1068 = vmatpush1.msra.mxu0 0.0
    %1069 = vmatprep.subr.mxu0 0.0
    %1070 = vmatpush1.msra.mxu0 0.0
    %1071 = vmatprep.subr.mxu0 0.0
    %1072 = vmatpush1.msra.mxu0 0.0
    %1073 = vmatprep.subr.mxu0 0.0
    %1074 = vmatpush1.msra.mxu0 0.0
    %1075 = vmatprep.subr.mxu0 0.0
    %1076 = vmatpush1.msra.mxu0 0.0
    %1077 = vmatprep.subr.mxu0 0.0
    %1078 = vmatpush1.msra.mxu0 0.0
    %1079 = vmatprep.subr.mxu0 0.0
    %1080 = vmatpush1.msra.mxu0 %v1051
    %1081 = vmatprep.subr.mxu0 0.0
    %1082 = vmatpush1.msra.mxu0 %v1050
    %1083 = vmatprep.subr.mxu0 0.0
    %1084 = vmatpush1.msra.mxu0 %v1049
    %1085 = vmatprep.subr.mxu0 0.0
    %1086 = vmatpush1.msra.mxu0 %v1048
    %1087 = vmatprep.subr.mxu0 0.0
    %1088 = vmatpush2.msra.mxu0 0.0
    %1089 = vmatprep.subr.mxu0 0.0
    %1090 = vmatpush2.msra.mxu0 0.0
    %1091 = vmatprep.subr.mxu0 0.0
    %1092 = vmatpush2.msra.mxu0 0.0
    %1093 = vmatprep.subr.mxu0 0.0
    %1094 = vmatpush2.msra.mxu0 0.0
    %1095 = vmatprep.subr.mxu0 0.0
    %1096 = vmatpush2.msra.mxu0 0.0
    %1097 = vmatprep.subr.mxu0 0.0
    %1098 = vmatpush2.msra.mxu0 0.0
    %1099 = vmatprep.subr.mxu0 0.0
    %1100 = vmatpush2.msra.mxu0 0.0
    %1101 = vmatprep.subr.mxu0 0.0
    %1102 = vmatpush2.msra.mxu0 0.0
    %1103 = vmatprep.subr.mxu0 0.0
    %1104 = vmatpush2.msra.mxu0 0.0
    %1105 = vmatprep.subr.mxu0 0.0
    %1106 = vmatpush2.msra.mxu0 0.0
    %1107 = vmatprep.subr.mxu0 0.0
    %1108 = vmatpush2.msra.mxu0 0.0
    %1109 = vmatprep.subr.mxu0 0.0
    %1110 = vmatpush2.msra.mxu0 0.0
    %1111 = vmatprep.subr.mxu0 0.0
    %1112 = vmatpush2.msra.mxu0 0.0
    %1113 = vmatprep.subr.mxu0 0.0
    %1114 = vmatpush2.msra.mxu0 0.0
    %1115 = vmatprep.subr.mxu0 0.0
    %1116 = vmatpush2.msra.mxu0 0.0
    %1117 = vmatprep.subr.mxu0 0.0
    %1118 = vmatpush2.msra.mxu0 0.0
    %1119 = vmatprep.mubr.f32.mxu0 0.0
    %1120 = vmatmul.mubr.f32.gmra.mxu0 %v1053
    %v1121 = vpop.f32.mrf.mxu0
    %v1122 = vadd.f32 0.0, %v1121
    %v1123 = vpop.f32.mrf.mxu0
    %1124 = vdwg.mxu0
    %v1125 = vadd.f32 %v1045, %v1122
    %v1126 = vld [vmem:[%s15] sm:$0x1]
    %v1128 = vlaneseq
    %v1129 = vshrl.u32 %v1128, 7
    %v1130 = vsub.s32 0, %v1129
    %v1131 = vrot.slane %v1126, %v1130
    %v1133 = vadd.f32 %v1125, %v1131
    %vm1134 = vcmask 48128
    %1135 = vst.msk [vmem:[#allocation2] sm:$0xff] %vm1134, %v1133
    // Predicated region
    $region66: #{tpu_custom_call.1} parent=1 // pred_check
      _
    $region67: #{tpu_custom_call.1} parent=1 // pred_check_branch
      %1137 = sbr.rel (0) target = $region69
    $region68: #{tpu_custom_call.1} parent=1 // pred_region
      %s1139 = ssub.s32 128, 128
      %1140 = vsyncadd [#allocation3], %s1139
      %s1142 = sshll.u32 [#allocation2], 4
      %s1143 = int_to_ptr.vmem [resolvable:$true] %s1142
      %1145 = dma.vmem_to_hbm [thread:$0]  %s1143, 128, %s16, [#allocation3]
    $region69: #{tpu_custom_call.1} parent=1 // pred_fallthru
      _
    // Predicated region
    $region70: #{tpu_custom_call.1} parent=1 // pred_check
      _
    $region71: #{tpu_custom_call.1} parent=1 // pred_check_branch
      %1147 = sbr.rel (0) target = $region73
    $region72: #{tpu_custom_call.1} parent=1 // pred_region
      %1148 = dma.done [#allocation3], 128
    $region73: #{tpu_custom_call.1} parent=1 // pred_fallthru
      _
    %1149 = vsyncpa [#allocation3], 1

</llo_original>
